<compile_context>
chip_gen: v7x
topology: tpu7x:2x2x1
jax: 0.10.0
libtpu: 0.0.40
codegen_flags: <defaults>
</compile_context>

<pallas_src>
import functools
import math

import jax
import jax.numpy as jnp
from jax import lax
from jax.experimental import pallas as pl
from jax.experimental.pallas import tpu as pltpu


def _resblock_kernel(x_ref, wt_ref, b_ref, g_ref, beta_ref, o_ref, *, eps):
    # x_ref:    (TM, D)  VMEM f32   input rows
    # wt_ref:   (D, D)   VMEM bf16  W^T (Linear weight, pre-transposed, single-buffered)
    # b_ref:    (1, D)   VMEM f32   Linear bias
    # g_ref:    (1, D)   VMEM f32   LayerNorm gamma
    # beta_ref: (1, D)   VMEM f32   LayerNorm beta
    # o_ref:    (TM, D)  VMEM f32   output rows
    x = x_ref[...]

    # --- LayerNorm over the last dim (per-row mean/var), all f32 on the VPU ---
    mean = jnp.mean(x, axis=-1, keepdims=True)
    xc = x - mean
    var = jnp.mean(xc * xc, axis=-1, keepdims=True)
    y = xc * lax.rsqrt(var + eps) * g_ref[...] + beta_ref[...]

    # --- Linear: y @ W^T + b on the MXU (bf16 operands, f32 accumulate) ---
    z = jnp.dot(y.astype(jnp.bfloat16), wt_ref[...],
                preferred_element_type=jnp.float32) + b_ref[...]

    # --- GELU (tanh approximation; EUP transcendental) ---
    # TODO(synk): PyTorch nn.GELU() default is the exact erf-based GELU; the tanh
    # approximation is used here (max abs deviation ~3e-4) for guaranteed Mosaic
    # lowering of the transcendental on the EUP.
    c = 0.7978845608028654  # sqrt(2/pi)
    gelu = 0.5 * z * (1.0 + jnp.tanh(c * (z + 0.044715 * z * z * z)))

    # --- residual add: re-read x from the resident VMEM tile (3 vld slots have
    # slack) rather than keeping it live in vregs across the matmul ---
    o_ref[...] = x_ref[...] + gelu


def prepare_weight(weight):
    """One-time parameter setup, hoisted out of the forward:
    PyTorch Linear weight (out, in) -> transposed (in, out) and cast to bf16."""
    return jnp.asarray(weight).T.astype(jnp.bfloat16)


def _choose_row_tile(n, block_rows):
    """Pick a row tile: multiple of 8, <= block_rows, and (when n >= 16) giving
    at least 2 grid steps so v7x's two TensorCores both get work."""
    if n <= 8:
        return n                       # full-extent block (always legal)
    tm = min(block_rows, n)
    tm = max(8, (tm // 8) * 8)         # snap down to sublane multiple, never tm=n fallback
    if tm >= n and n >= 16:
        tm = max(8, ((n // 2) // 8) * 8)
    return tm


def resblock(x, wt_bf16, bias, gamma, beta, *, eps=1e-5, block_rows=512):
    """x: (..., D) f32. wt_bf16: (D, D) = weight.T in bf16 (see prepare_weight).
    bias/gamma/beta: (D,)."""
    orig_shape = x.shape
    d = orig_shape[-1]
    assert d % 128 == 0, f"feature dim {d} must be a multiple of 128 (lane-dense blocks)"
    assert wt_bf16.shape == (d, d), wt_bf16.shape

    x2 = x.reshape(-1, d).astype(jnp.float32)
    n = x2.shape[0]

    tm = _choose_row_tile(n, block_rows)
    grid = (pl.cdiv(n, tm),)

    b2 = bias.reshape(1, d).astype(jnp.float32)
    g2 = gamma.reshape(1, d).astype(jnp.float32)
    bt2 = beta.reshape(1, d).astype(jnp.float32)

    # VMEM budget: double-buffered x/out tiles + single-buffered bf16 weight
    # + sublane-padded param rows. Leave headroom, cap at v7x's 64 MiB physical.
    need = (2 * 2 * tm * d * 4          # x in + out, double-buffered f32
            + d * d * 2                 # weight, bf16, single-buffered
            + 2 * 3 * 8 * d * 4)        # bias/gamma/beta, (8, D)-padded, double-buffered
    vmem_limit = int(min(64 * 1024 * 1024, 2 * need + (2 << 20)))

    cost = pl.CostEstimate(
        flops=2 * n * d * d,
        transcendentals=n * d,
        bytes_accessed=2 * 4 * n * d + 2 * d * d + 3 * 4 * d,
    )

    kernel = functools.partial(_resblock_kernel, eps=eps)
    out = pl.pallas_call(
        kernel,
        out_shape=jax.ShapeDtypeStruct((n, d), jnp.float32),
        grid=grid,
        in_specs=[
            pl.BlockSpec((tm, d), lambda i: (i, 0)),       # x rows: tiled over grid
            pl.BlockSpec((d, d), lambda i: (0, 0),         # W^T: invariant, single-buffered
                         pipeline_mode=pl.Buffered(1)),
            pl.BlockSpec((1, d), lambda i: (0, 0)),        # bias: invariant
            pl.BlockSpec((1, d), lambda i: (0, 0)),        # gamma: invariant
            pl.BlockSpec((1, d), lambda i: (0, 0)),        # beta: invariant
        ],
        out_specs=pl.BlockSpec((tm, d), lambda i: (i, 0)),
        compiler_params=pltpu.CompilerParams(
            dimension_semantics=("parallel",),
            vmem_limit_bytes=vmem_limit,
        ),
        cost_estimate=cost,
    )(x2, wt_bf16, b2, g2, bt2)
    return out.reshape(orig_shape).astype(x.dtype)


def reference_f32(x, weight, bias, gamma, beta, eps=1e-5):
    """Pure-f32 reference matching the PyTorch module (tanh-GELU)."""
    mean = jnp.mean(x, axis=-1, keepdims=True)
    var = jnp.mean((x - mean) ** 2, axis=-1, keepdims=True)
    y = (x - mean) / jnp.sqrt(var + eps) * gamma + beta
    z = y @ weight.T + bias
    c = 0.7978845608028654
    return x + 0.5 * z * (1.0 + jnp.tanh(c * (z + 0.044715 * z ** 3)))


def reference_bf16_matmul(x, wt_bf16, bias, gamma, beta, eps=1e-5):
    """Reference using the same bf16-operand / f32-accumulate matmul as the kernel."""
    mean = jnp.mean(x, axis=-1, keepdims=True)
    var = jnp.mean((x - mean) ** 2, axis=-1, keepdims=True)
    y = (x - mean) / jnp.sqrt(var + eps) * gamma + beta
    z = jnp.dot(y.astype(jnp.bfloat16), wt_bf16,
                preferred_element_type=jnp.float32) + bias
    c = 0.7978845608028654
    return x + 0.5 * z * (1.0 + jnp.tanh(c * (z + 0.044715 * z ** 3)))


if __name__ == "__main__":
    batch, seq, d_model = 2, 8, 256     # 16 rows, D=256 -> lane-dense blocks

    key = jax.random.PRNGKey(0)
    k1, k2, k3, k4, k5 = jax.random.split(key, 5)
    x = jax.random.normal(k1, (batch, seq, d_model), dtype=jnp.float32)
    weight = jax.random.normal(k2, (d_model, d_model), dtype=jnp.float32) / math.sqrt(d_model)
    bias = 0.1 * jax.random.normal(k3, (d_model,), dtype=jnp.float32)
    gamma = 1.0 + 0.1 * jax.random.normal(k4, (d_model,), dtype=jnp.float32)
    beta = 0.1 * jax.random.normal(k5, (d_model,), dtype=jnp.float32)

    # One-time weight prep (transpose + bf16 cast), hoisted out of the forward.
    wt_bf16 = prepare_weight(weight)

    # With n=16 rows the tile picker chooses tm=8 -> grid=(2,), so the row
    # pipeline and the two-TensorCore split are actually exercised.
    out = resblock(x, wt_bf16, bias, gamma, beta)
    out = jax.block_until_ready(out)
    assert out.shape == x.shape, out.shape

    # Tight check vs a reference using the identical bf16-matmul numerics.
    ref_bf16 = reference_bf16_matmul(x, wt_bf16, bias, gamma, beta)
    err_bf16 = float(jnp.max(jnp.abs(out - ref_bf16)))
    assert jnp.allclose(out, ref_bf16, atol=2e-3, rtol=2e-3), \
        f"mismatch vs bf16-matmul reference, max abs err={err_bf16}"

    # Loose check vs the pure-f32 module semantics (bf16 operand quantization
    # in the matmul is the only deviation).
    ref_f32 = reference_f32(x, weight, bias, gamma, beta)
    err_f32 = float(jnp.max(jnp.abs(out - ref_f32)))
    assert jnp.allclose(out, ref_f32, atol=3e-2, rtol=3e-2), \
        f"mismatch vs f32 reference, max abs err={err_f32}"

    print("KERNEL_OK")
</pallas_src>

<mosaic_0001>
module attributes {stable_mosaic.version = 11 : i64} {
  func.func @_resblock_kernel(%arg0: i32, %arg1: memref<8x256xf32, #tpu.memory_space<vmem>>, %arg2: memref<256x256xbf16, #tpu.memory_space<vmem>>, %arg3: memref<1x256xf32, #tpu.memory_space<vmem>>, %arg4: memref<1x256xf32, #tpu.memory_space<vmem>>, %arg5: memref<1x256xf32, #tpu.memory_space<vmem>>, %arg6: memref<8x256xf32, #tpu.memory_space<vmem>>) attributes {dimension_semantics = [#tpu.dimension_semantics<parallel>], iteration_bounds = array<i64: 2>, scalar_prefetch = 0 : i64, scratch_operands = 0 : i64, tpu.core_type = #tpu.core_type<tc>, window_params = [{transform_indices = @transform_0, window_bounds = array<i64: 8, 256>}, {pipeline_mode = #tpu.pipeline_mode<synchronous>, transform_indices = @transform_1, window_bounds = array<i64: 256, 256>}, {pipeline_mode = #tpu.pipeline_mode<synchronous>, transform_indices = @transform_2, window_bounds = array<i64: 1, 256>}, {pipeline_mode = #tpu.pipeline_mode<synchronous>, transform_indices = @transform_3, window_bounds = array<i64: 1, 256>}, {pipeline_mode = #tpu.pipeline_mode<synchronous>, transform_indices = @transform_4, window_bounds = array<i64: 1, 256>}, {transform_indices = @transform_5, window_bounds = array<i64: 8, 256>}]} {
    %c0 = arith.constant 0 : index
    %c0_0 = arith.constant 0 : index
    %0 = vector.load %arg1[%c0, %c0_0] : memref<8x256xf32, #tpu.memory_space<vmem>>, vector<8x256xf32>
    %cst = arith.constant dense<0.000000e+00> : vector<8xf32>
    %1 = vector.multi_reduction <add>, %0, %cst [1] : vector<8x256xf32> to vector<8xf32>
    %2 = vector.shape_cast %1 : vector<8xf32> to vector<8x1xf32>
    %cst_1 = arith.constant 2.560000e+02 : f32
    %3 = vector.broadcast %cst_1 : f32 to vector<8x1xf32>
    %4 = arith.divf %2, %3 : vector<8x1xf32>
    %5 = vector.broadcast %4 : vector<8x1xf32> to vector<8x256xf32>
    %6 = arith.subf %0, %5 : vector<8x256xf32>
    %7 = arith.mulf %6, %6 : vector<8x256xf32>
    %cst_2 = arith.constant dense<0.000000e+00> : vector<8xf32>
    %8 = vector.multi_reduction <add>, %7, %cst_2 [1] : vector<8x256xf32> to vector<8xf32>
    %9 = vector.shape_cast %8 : vector<8xf32> to vector<8x1xf32>
    %cst_3 = arith.constant 2.560000e+02 : f32
    %10 = vector.broadcast %cst_3 : f32 to vector<8x1xf32>
    %11 = arith.divf %9, %10 : vector<8x1xf32>
    %cst_4 = arith.constant 9.99999974E-6 : f32
    %12 = vector.broadcast %cst_4 : f32 to vector<8x1xf32>
    %13 = arith.addf %11, %12 : vector<8x1xf32>
    %14 = math.rsqrt %13 : vector<8x1xf32>
    %15 = vector.broadcast %14 : vector<8x1xf32> to vector<8x256xf32>
    %16 = arith.mulf %6, %15 : vector<8x256xf32>
    %c0_5 = arith.constant 0 : index
    %c0_6 = arith.constant 0 : index
    %17 = vector.load %arg4[%c0_5, %c0_6] : memref<1x256xf32, #tpu.memory_space<vmem>>, vector<1x256xf32>
    %18 = vector.broadcast %17 : vector<1x256xf32> to vector<8x256xf32>
    %19 = arith.mulf %16, %18 : vector<8x256xf32>
    %c0_7 = arith.constant 0 : index
    %c0_8 = arith.constant 0 : index
    %20 = vector.load %arg5[%c0_7, %c0_8] : memref<1x256xf32, #tpu.memory_space<vmem>>, vector<1x256xf32>
    %21 = vector.broadcast %20 : vector<1x256xf32> to vector<8x256xf32>
    %22 = arith.addf %19, %21 : vector<8x256xf32>
    %23 = arith.truncf %22 : vector<8x256xf32> to vector<8x256xbf16>
    %c0_9 = arith.constant 0 : index
    %c0_10 = arith.constant 0 : index
    %24 = vector.load %arg2[%c0_9, %c0_10] : memref<256x256xbf16, #tpu.memory_space<vmem>>, vector<256x256xbf16>
    %cst_11 = arith.constant dense<0.000000e+00> : vector<8x256xf32>
    %25 = tpu.matmul %23, %24, %cst_11 {dimension_numbers = #tpu.dot_dimension_numbers<[1], [0], [0], [1], [0, 0, 1, 1], [], []>} : vector<8x256xbf16>, vector<256x256xbf16>, vector<8x256xf32> -> vector<8x256xf32>
    %c0_12 = arith.constant 0 : index
    %c0_13 = arith.constant 0 : index
    %26 = vector.load %arg3[%c0_12, %c0_13] : memref<1x256xf32, #tpu.memory_space<vmem>>, vector<1x256xf32>
    %27 = vector.broadcast %26 : vector<1x256xf32> to vector<8x256xf32>
    %28 = arith.addf %25, %27 : vector<8x256xf32>
    %cst_14 = arith.constant 5.000000e-01 : f32
    %29 = vector.broadcast %cst_14 : f32 to vector<8x256xf32>
    %30 = arith.mulf %29, %28 : vector<8x256xf32>
    %cst_15 = arith.constant 4.471500e-02 : f32
    %31 = vector.broadcast %cst_15 : f32 to vector<8x256xf32>
    %32 = arith.mulf %31, %28 : vector<8x256xf32>
    %33 = arith.mulf %32, %28 : vector<8x256xf32>
    %34 = arith.mulf %33, %28 : vector<8x256xf32>
    %35 = arith.addf %28, %34 : vector<8x256xf32>
    %cst_16 = arith.constant 0.797884583 : f32
    %36 = vector.broadcast %cst_16 : f32 to vector<8x256xf32>
    %37 = arith.mulf %36, %35 : vector<8x256xf32>
    %38 = math.tanh %37 : vector<8x256xf32>
    %cst_17 = arith.constant 1.000000e+00 : f32
    %39 = vector.broadcast %cst_17 : f32 to vector<8x256xf32>
    %40 = arith.addf %39, %38 : vector<8x256xf32>
    %41 = arith.mulf %30, %40 : vector<8x256xf32>
    %c0_18 = arith.constant 0 : index
    %c0_19 = arith.constant 0 : index
    %42 = vector.load %arg1[%c0_18, %c0_19] : memref<8x256xf32, #tpu.memory_space<vmem>>, vector<8x256xf32>
    %43 = arith.addf %42, %41 : vector<8x256xf32>
    %c0_20 = arith.constant 0 : index
    %c0_21 = arith.constant 0 : index
    %44 = vector.load %arg6[%c0_20, %c0_21] : memref<8x256xf32, #tpu.memory_space<vmem>>, vector<8x256xf32>
    tpu.vector_store %arg6[%c0_20, %c0_21], %43 {strides = array<i32>} : memref<8x256xf32, #tpu.memory_space<vmem>>, vector<8x256xf32>,
    return
  }
  func.func @transform_0(%arg0: i32) -> (i32, i32) {
    %c0_i32 = arith.constant 0 : i32
    %c0_i32_0 = arith.constant 0 : i32
    return %arg0, %c0_i32 : i32, i32
  }
  func.func @transform_1(%arg0: i32) -> (i32, i32) {
    %c0_i32 = arith.constant 0 : i32
    %c0_i32_0 = arith.constant 0 : i32
    %c0_i32_1 = arith.constant 0 : i32
    return %c0_i32, %c0_i32_0 : i32, i32
  }
  func.func @transform_2(%arg0: i32) -> (i32, i32) {
    %c0_i32 = arith.constant 0 : i32
    %c0_i32_0 = arith.constant 0 : i32
    %c0_i32_1 = arith.constant 0 : i32
    return %c0_i32, %c0_i32_0 : i32, i32
  }
  func.func @transform_3(%arg0: i32) -> (i32, i32) {
    %c0_i32 = arith.constant 0 : i32
    %c0_i32_0 = arith.constant 0 : i32
    %c0_i32_1 = arith.constant 0 : i32
    return %c0_i32, %c0_i32_0 : i32, i32
  }
  func.func @transform_4(%arg0: i32) -> (i32, i32) {
    %c0_i32 = arith.constant 0 : i32
    %c0_i32_0 = arith.constant 0 : i32
    %c0_i32_1 = arith.constant 0 : i32
    return %c0_i32, %c0_i32_0 : i32, i32
  }
  func.func @transform_5(%arg0: i32) -> (i32, i32) {
    %c0_i32 = arith.constant 0 : i32
    %c0_i32_0 = arith.constant 0 : i32
    return %arg0, %c0_i32 : i32, i32
  }
}

</mosaic_0001>

<llo_original>
// kernel: tpu_custom_call.1
$region0: #{tpu_custom_call.1}
  #allocation0 [shape = 'u32[]', space=smem, size = 0x4, offset = 0x4, fixed_abs, tag = 'smem constant byte address 0x4 - core index']
  #allocation1 [shape = 'u32[144,128]{1,0:T(1,128)}', space=vmem, size = 0x12000, scoped, tag = 'internal scratch']
  %s0 = inlined_call_operand.hbm [shape: f32[16,256], index: 0, kind: input, shape index: {}]
  %s1 = inlined_call_operand.hbm [shape: bf16[256,256], index: 1, kind: input, shape index: {}]
  %s2 = inlined_call_operand.vmem [shape: f32[1,256], index: 2, kind: input, shape index: {}]
  %s3 = inlined_call_operand.vmem [shape: f32[1,256], index: 3, kind: input, shape index: {}]
  %s4 = inlined_call_operand.vmem [shape: f32[1,256], index: 4, kind: input, shape index: {}]
  %s5 = inlined_call_operand.hbm [shape: f32[16,256], index: 5, kind: output, shape index: {}]
  %s6 = sld [smem:[#allocation0]]
  $region61: #{tpu_custom_call.1} parent=0
    _
  %s8 = ssub.s32 1, %s6
  %s9 = scalar_select 0, %s8, %s6
  $region1: #{tpu_custom_call.1} parent=0
    #allocation2 [shape = 'u8[16384]{0}', space=vmem, size = 0x4000, scoped, tag = 'input window, operand 0']
    #allocation3 [shape = 's32[2]{0}', space=sflag, size = 0x8, scoped, tag = 'scoped memory for tpu_custom_call.1']
    #allocation4 [shape = 's32[2]{0}', space=sflag, size = 0x8, scoped, tag = 'scoped memory for tpu_custom_call.1']
    #allocation5 [shape = 'u8[131072]{0}', space=vmem, size = 0x20000, scoped, tag = 'input window, operand 1, single buffered']
    #allocation6 [shape = 's32[1]{0}', space=sflag, size = 0x4, scoped, tag = 'scoped memory for tpu_custom_call.1']
    #allocation7 [shape = 'u8[16384]{0}', space=vmem, size = 0x4000, scoped, tag = 'output window, operand 0']
    %10 = vsyncpa [#allocation3], 0
    %s11 = scalar_lea.sflag [#allocation3], 1
    %12 = vsyncpa %s11, 0
    %13 = vsyncpa [#allocation6], 0
    %14 = vsyncpa [#allocation4], 0
    %s15 = scalar_lea.sflag [#allocation4], 1
    %16 = vsyncpa %s15, 0
    loop: start=0, step=1, limit=4
    $region2: #{tpu_custom_call.1} parent=1 // loop_pre_header
      _
    $region3: #{tpu_custom_call.1} parent=1 // loop_header
      %s18 = sphi 0, %s22
      %p19 = scmp.ge.s32.totalorder %s18, 4
      %s28 = sphi 0, %s30
      %s31 = sphi 0, %s28
      %s32 = sphi 0, %s31
      %s48 = sphi 0, %s32
      %s52 = sphi 0, %s52
      %s54 = sphi 0, %s52
      %s55 = sphi 0, %s54
      %s69 = sphi 0, %s55
      %s73 = sphi 0, %s73
      %s75 = sphi 0, %s73
      %s76 = sphi 0, %s75
      %s90 = sphi 0, %s76
      %s94 = sphi 0, %s94
      %s96 = sphi 0, %s94
      %s97 = sphi 0, %s96
      %s111 = sphi 0, %s97
      %s115 = sphi 0, %s115
      %s117 = sphi 0, %s115
      %s118 = sphi 0, %s117
      %s132 = sphi 0, %s118
      %s138 = sphi 0, %s140
      %s141 = sphi 0, %s138
      %s142 = sphi 0, %s141
      %s158 = sphi 0, %s142
    $region4: #{tpu_custom_call.1} parent=1 // loop_header_branch
      %21 = sbr.rel (%p19) target = $region8
    $region5: #{tpu_custom_call.1} parent=1 // loop_body
      %s23 = ssub.s32 %s18, 1
      %s24 = ssub.s32 %s18, 2
      %s25 = sadd.s32 %s18, 1
      %s26 = ssub.s32 %s18, %s25
      %p27 = scmp.eq.s32.totalorder %s26, 0
      %s29 = sadd.s32 %s28, 1
      %s30 = scalar_select %p27, %s28, %s29
      %p33 = pneg %p27
      %p34 = scmp.eq.s32.totalorder %s18, 1
      %p35 = por %p33, %p34
      %p36 = scmp.ne.s32.totalorder %s28, %s31
      %p37 = scmp.eq.s32.totalorder %s18, 0
      %p38 = por %p36, %p37
      %p39 = scmp.ne.s32.totalorder %s28, %s31
      %p40 = scmp.eq.s32.totalorder %s23, 1
      %p41 = por %p39, %p40
      %p42 = scmp.ne.s32.totalorder %s31, %s32
      %p43 = scmp.eq.s32.totalorder %s23, 0
      %p44 = por %p42, %p43
      %p45 = scmp.ne.s32.totalorder %s31, %s32
      %p46 = scmp.eq.s32.totalorder %s24, 1
      %p47 = por %p45, %p46
      %p49 = scmp.ne.s32.totalorder %s32, %s48
      %p50 = scmp.eq.s32.totalorder %s24, 0
      %p51 = por %p49, %p50
      %s53 = sadd.s32 %s52, 1
      %p56 = scmp.eq.s32.totalorder %s18, 1
      %p57 = scmp.ne.s32.totalorder %s52, %s54
      %p58 = scmp.eq.s32.totalorder %s18, 0
      %p59 = por %p57, %p58
      %p60 = scmp.ne.s32.totalorder %s52, %s54
      %p61 = scmp.eq.s32.totalorder %s23, 1
      %p62 = por %p60, %p61
      %p63 = scmp.ne.s32.totalorder %s54, %s55
      %p64 = scmp.eq.s32.totalorder %s23, 0
      %p65 = por %p63, %p64
      %p66 = scmp.ne.s32.totalorder %s54, %s55
      %p67 = scmp.eq.s32.totalorder %s24, 1
      %p68 = por %p66, %p67
      %p70 = scmp.ne.s32.totalorder %s55, %s69
      %p71 = scmp.eq.s32.totalorder %s24, 0
      %p72 = por %p70, %p71
      %s74 = sadd.s32 %s73, 1
      %p77 = scmp.eq.s32.totalorder %s18, 1
      %p78 = scmp.ne.s32.totalorder %s73, %s75
      %p79 = scmp.eq.s32.totalorder %s18, 0
      %p80 = por %p78, %p79
      %p81 = scmp.ne.s32.totalorder %s73, %s75
      %p82 = scmp.eq.s32.totalorder %s23, 1
      %p83 = por %p81, %p82
      %p84 = scmp.ne.s32.totalorder %s75, %s76
      %p85 = scmp.eq.s32.totalorder %s23, 0
      %p86 = por %p84, %p85
      %p87 = scmp.ne.s32.totalorder %s75, %s76
      %p88 = scmp.eq.s32.totalorder %s24, 1
      %p89 = por %p87, %p88
      %p91 = scmp.ne.s32.totalorder %s76, %s90
      %p92 = scmp.eq.s32.totalorder %s24, 0
      %p93 = por %p91, %p92
      %s95 = sadd.s32 %s94, 1
      %p98 = scmp.eq.s32.totalorder %s18, 1
      %p99 = scmp.ne.s32.totalorder %s94, %s96
      %p100 = scmp.eq.s32.totalorder %s18, 0
      %p101 = por %p99, %p100
      %p102 = scmp.ne.s32.totalorder %s94, %s96
      %p103 = scmp.eq.s32.totalorder %s23, 1
      %p104 = por %p102, %p103
      %p105 = scmp.ne.s32.totalorder %s96, %s97
      %p106 = scmp.eq.s32.totalorder %s23, 0
      %p107 = por %p105, %p106
      %p108 = scmp.ne.s32.totalorder %s96, %s97
      %p109 = scmp.eq.s32.totalorder %s24, 1
      %p110 = por %p108, %p109
      %p112 = scmp.ne.s32.totalorder %s97, %s111
      %p113 = scmp.eq.s32.totalorder %s24, 0
      %p114 = por %p112, %p113
      %s116 = sadd.s32 %s115, 1
      %p119 = scmp.eq.s32.totalorder %s18, 1
      %p120 = scmp.ne.s32.totalorder %s115, %s117
      %p121 = scmp.eq.s32.totalorder %s18, 0
      %p122 = por %p120, %p121
      %p123 = scmp.ne.s32.totalorder %s115, %s117
      %p124 = scmp.eq.s32.totalorder %s23, 1
      %p125 = por %p123, %p124
      %p126 = scmp.ne.s32.totalorder %s117, %s118
      %p127 = scmp.eq.s32.totalorder %s23, 0
      %p128 = por %p126, %p127
      %p129 = scmp.ne.s32.totalorder %s117, %s118
      %p130 = scmp.eq.s32.totalorder %s24, 1
      %p131 = por %p129, %p130
      %p133 = scmp.ne.s32.totalorder %s118, %s132
      %p134 = scmp.eq.s32.totalorder %s24, 0
      %p135 = por %p133, %p134
      %s136 = ssub.s32 %s18, %s25
      %p137 = scmp.eq.s32.totalorder %s136, 0
      %s139 = sadd.s32 %s138, 1
      %s140 = scalar_select %p137, %s138, %s139
      %p143 = pneg %p137
      %p144 = scmp.eq.s32.totalorder %s18, 1
      %p145 = por %p143, %p144
      %p146 = scmp.ne.s32.totalorder %s138, %s141
      %p147 = scmp.eq.s32.totalorder %s18, 0
      %p148 = por %p146, %p147
      %p149 = scmp.ne.s32.totalorder %s138, %s141
      %p150 = scmp.eq.s32.totalorder %s23, 1
      %p151 = por %p149, %p150
      %p152 = scmp.ne.s32.totalorder %s141, %s142
      %p153 = scmp.eq.s32.totalorder %s23, 0
      %p154 = por %p152, %p153
      %p155 = scmp.ne.s32.totalorder %s141, %s142
      %p156 = scmp.eq.s32.totalorder %s24, 1
      %p157 = por %p155, %p156
      %p159 = scmp.ne.s32.totalorder %s142, %s158
      %p160 = scmp.eq.s32.totalorder %s24, 0
      %p161 = por %p159, %p160
      %p162 = scmp.le.s32.totalorder 1, %s18
      %p163 = scmp.lt.s32.totalorder %s18, 3
      %p164 = pnand %p162, %p163
      %p165 = pneg %p164
      // Predicated region
      $region9: #{tpu_custom_call.1} parent=5 // pred_check
        _
      $region10: #{tpu_custom_call.1} parent=5 // pred_check_branch
        %167 = sbr.rel (%p164) target = $region12
      $region11: #{tpu_custom_call.1} parent=5 // pred_region
        %s168 = ssub.s32 %s18, 1
        // Predicated region
        $region13: #{tpu_custom_call.1} parent=11 // pred_check
          %p169 = pneg %p65
        $region14: #{tpu_custom_call.1} parent=11 // pred_check_branch
          %171 = sbr.rel (%p169) target = $region16
        $region15: #{tpu_custom_call.1} parent=11 // pred_region
          %s173 = ssub.s32 4096, 4096
          %174 = vsyncadd [#allocation6], %s173
          %s175 = sshll.u32 [#allocation5], 4
          %s176 = int_to_ptr.vmem [resolvable:$true] %s175
          %181 = dma.hbm_to_vmem [thread:$0]  %s1, 4096, %s176, [#allocation6], 128, 128, 8
        $region16: #{tpu_custom_call.1} parent=11 // pred_fallthru
          _
        // Predicated region
        $region17: #{tpu_custom_call.1} parent=11 // pred_check
          %p182 = pneg %p86
        $region18: #{tpu_custom_call.1} parent=11 // pred_check_branch
          %184 = sbr.rel (%p182) target = $region20
        $region19: #{tpu_custom_call.1} parent=11 // pred_region
          _
        $region20: #{tpu_custom_call.1} parent=11 // pred_fallthru
          _
        // Predicated region
        $region21: #{tpu_custom_call.1} parent=11 // pred_check
          %p185 = pneg %p107
        $region22: #{tpu_custom_call.1} parent=11 // pred_check_branch
          %187 = sbr.rel (%p185) target = $region24
        $region23: #{tpu_custom_call.1} parent=11 // pred_region
          _
        $region24: #{tpu_custom_call.1} parent=11 // pred_fallthru
          _
        // Predicated region
        $region25: #{tpu_custom_call.1} parent=11 // pred_check
          %p188 = pneg %p128
        $region26: #{tpu_custom_call.1} parent=11 // pred_check_branch
          %190 = sbr.rel (%p188) target = $region28
        $region27: #{tpu_custom_call.1} parent=11 // pred_region
          _
        $region28: #{tpu_custom_call.1} parent=11 // pred_fallthru
          _
      $region12: #{tpu_custom_call.1} parent=5 // pred_fallthru
        _
      %p191 = scmp.lt.s32.totalorder %s18, 2
      // Predicated region
      $region29: #{tpu_custom_call.1} parent=5 // pred_check
        %p192 = pneg %p191
      $region30: #{tpu_custom_call.1} parent=5 // pred_check_branch
        %194 = sbr.rel (%p192) target = $region32
      $region31: #{tpu_custom_call.1} parent=5 // pred_region
        // Predicated region
        $region33: #{tpu_custom_call.1} parent=31 // pred_check
          %p195 = pneg %p38
        $region34: #{tpu_custom_call.1} parent=31 // pred_check_branch
          %197 = sbr.rel (%p195) target = $region36
        $region35: #{tpu_custom_call.1} parent=31 // pred_region
          %s198 = sand.u32 %s28, 1
          %s199 = scalar_lea.sflag [#allocation3], %s198
          %s200 = sand.u32 %s28, 1
          %s201 = smul.addr %s200, 16
          %s202 = scalar_lea.vmem [#allocation2], %s201
          %s204 = ssub.s32 256, 256
          %205 = vsyncadd %s199, %s204
          %s206 = smul.addr %s18, 2
          %s207 = smul.addr %s206, 128
          %s208 = scalar_lea.hbm %s0, %s207
          %s210 = sshll.u32 %s202, 4
          %s211 = int_to_ptr.vmem [resolvable:$true] %s210
          %213 = dma.hbm_to_vmem [thread:$0]  %s208, 256, %s211, %s199
        $region36: #{tpu_custom_call.1} parent=31 // pred_fallthru
          _
      $region32: #{tpu_custom_call.1} parent=5 // pred_fallthru
        _
      %p214 = scmp.le.s32.totalorder 1, %s18
      %p215 = scmp.lt.s32.totalorder %s18, 3
      %p216 = pnand %p214, %p215
      %p217 = pneg %p216
      // Predicated region
      $region37: #{tpu_custom_call.1} parent=5 // pred_check
        _
      $region38: #{tpu_custom_call.1} parent=5 // pred_check_branch
        %219 = sbr.rel (%p216) target = $region40
      $region39: #{tpu_custom_call.1} parent=5 // pred_region
        %s220 = ssub.s32 %s18, 1
        %s221 = sand.u32 %s31, 1
        %s222 = scalar_lea.sflag [#allocation3], %s221
        %s223 = sand.u32 %s31, 1
        %s224 = smul.addr %s223, 16
        %s225 = scalar_lea.vmem [#allocation2], %s224
        // Predicated region
        $region41: #{tpu_custom_call.1} parent=39 // pred_check
          %p226 = pneg %p44
        $region42: #{tpu_custom_call.1} parent=39 // pred_check_branch
          %228 = sbr.rel (%p226) target = $region44
        $region43: #{tpu_custom_call.1} parent=39 // pred_region
          %229 = dma.done %s222, 256
        $region44: #{tpu_custom_call.1} parent=39 // pred_fallthru
          _
        // Predicated region
        $region45: #{tpu_custom_call.1} parent=39 // pred_check
          %p230 = pneg %p65
        $region46: #{tpu_custom_call.1} parent=39 // pred_check_branch
          %232 = sbr.rel (%p230) target = $region48
        $region47: #{tpu_custom_call.1} parent=39 // pred_region
          %233 = dma.done [#allocation6], 4096
        $region48: #{tpu_custom_call.1} parent=39 // pred_fallthru
          _
        %s234 = sand.u32 %s31, 1
        %s235 = scalar_lea.sflag [#allocation3], %s234
        %s236 = sand.u32 %s31, 1
        %s237 = smul.addr %s236, 16
        %s238 = scalar_lea.vmem [#allocation2], %s237
        %p239 = pneg %p44
        %p240 = pneg %p41
        %p241 = pneg %p65
        %p242 = pneg %p62
        %p243 = pneg %p86
        %p244 = pneg %p83
        %p245 = pneg %p107
        %p246 = pneg %p104
        %p247 = pneg %p128
        %p248 = pneg %p125
        %p249 = pneg %p154
        %p250 = pneg %p151
        %s251 = sand.u32 %s141, 1
        %s252 = scalar_lea.sflag [#allocation4], %s251
        %s253 = sand.u32 %s141, 1
        %s254 = smul.addr %s253, 16
        %s255 = scalar_lea.vmem [#allocation7], %s254
        %v256 = vld [vmem:[%s225] sm:$0xff]
        %v257 = vld [vmem:[%s225 + $0x8] sm:$0xff]
        %v258 = vadd.f32 %v256, %v257
        %259 = vadd.xlane.f32.xlu0 %v258
        %v260 = vpop.xlane.xlu0 %259
        %v261 = vrcp.pop 256.0
        %v262 = vmul.f32 %v260, %v261
        %v263 = vsub.f32 %v256, %v262
        %v264 = vsub.f32 %v257, %v262
        %v265 = vmul.f32 %v263, %v263
        %v266 = vmul.f32 %v264, %v264
        %v267 = vadd.f32 %v265, %v266
        %268 = vadd.xlane.f32.xlu0 %v267
        %v269 = vpop.xlane.xlu0 %268
        %v270 = vmul.f32 %v269, %v261
        %v271 = vadd.f32 %v270, 1e-05
        %v272 = vrsqrt.pop %v271
        %v273 = vmul.f32 %v263, %v272
        %v274 = vmul.f32 %v264, %v272
        %v275 = vld [vmem:[%s3] sm:$0x3]
        %v277 = vlaneseq
        %v278 = vshrl.u32 %v277, 7
        %v279 = vsub.s32 0, %v278
        %v280 = vrot.slane %v275, %v279
        %v281 = vlaneseq
        %v282 = vshrl.u32 %v281, 7
        %v283 = vsub.s32 1, %v282
        %v284 = vrot.slane %v275, %v283
        %v287 = vmul.f32 %v273, %v280
        %v288 = vmul.f32 %v274, %v284
        %v289 = vld [vmem:[%s4] sm:$0x3]
        %v291 = vlaneseq
        %v292 = vshrl.u32 %v291, 7
        %v293 = vsub.s32 0, %v292
        %v294 = vrot.slane %v289, %v293
        %v295 = vlaneseq
        %v296 = vshrl.u32 %v295, 7
        %v297 = vsub.s32 1, %v296
        %v298 = vrot.slane %v289, %v297
        %v301 = vadd.f32 %v287, %v294
        %v302 = vadd.f32 %v288, %v298
        %v303 = vpack.c.bf16 %v301, %v301
        %v304 = vpack.c.bf16 %v302, %v302
        %v305 = vld [vmem:[#allocation5] sm:$0xff]
        %v306 = vld [vmem:[#allocation5 + $0x8] sm:$0xff]
        %v307 = vld [vmem:[#allocation5 + $0x10] sm:$0xff]
        %v308 = vld [vmem:[#allocation5 + $0x18] sm:$0xff]
        %v309 = vld [vmem:[#allocation5 + $0x20] sm:$0xff]
        %v310 = vld [vmem:[#allocation5 + $0x28] sm:$0xff]
        %v311 = vld [vmem:[#allocation5 + $0x30] sm:$0xff]
        %v312 = vld [vmem:[#allocation5 + $0x38] sm:$0xff]
        %v313 = vld [vmem:[#allocation5 + $0x40] sm:$0xff]
        %v314 = vld [vmem:[#allocation5 + $0x48] sm:$0xff]
        %v315 = vld [vmem:[#allocation5 + $0x50] sm:$0xff]
        %v316 = vld [vmem:[#allocation5 + $0x58] sm:$0xff]
        %v317 = vld [vmem:[#allocation5 + $0x60] sm:$0xff]
        %v318 = vld [vmem:[#allocation5 + $0x68] sm:$0xff]
        %v319 = vld [vmem:[#allocation5 + $0x70] sm:$0xff]
        %v320 = vld [vmem:[#allocation5 + $0x78] sm:$0xff]
        %v321 = vld [vmem:[#allocation5 + $0x80] sm:$0xff]
        %v322 = vld [vmem:[#allocation5 + $0x88] sm:$0xff]
        %v323 = vld [vmem:[#allocation5 + $0x90] sm:$0xff]
        %v324 = vld [vmem:[#allocation5 + $0x98] sm:$0xff]
        %v325 = vld [vmem:[#allocation5 + $0xa0] sm:$0xff]
        %v326 = vld [vmem:[#allocation5 + $0xa8] sm:$0xff]
        %v327 = vld [vmem:[#allocation5 + $0xb0] sm:$0xff]
        %v328 = vld [vmem:[#allocation5 + $0xb8] sm:$0xff]
        %v329 = vld [vmem:[#allocation5 + $0xc0] sm:$0xff]
        %v330 = vld [vmem:[#allocation5 + $0xc8] sm:$0xff]
        %v331 = vld [vmem:[#allocation5 + $0xd0] sm:$0xff]
        %v332 = vld [vmem:[#allocation5 + $0xd8] sm:$0xff]
        %v333 = vld [vmem:[#allocation5 + $0xe0] sm:$0xff]
        %v334 = vld [vmem:[#allocation5 + $0xe8] sm:$0xff]
        %v335 = vld [vmem:[#allocation5 + $0xf0] sm:$0xff]
        %v336 = vld [vmem:[#allocation5 + $0xf8] sm:$0xff]
        %v337 = vld [vmem:[%s2] sm:$0x3]
        %v339 = vlaneseq
        %v340 = vshrl.u32 %v339, 7
        %v341 = vsub.s32 0, %v340
        %v342 = vrot.slane %v337, %v341
        %v343 = vlaneseq
        %v344 = vshrl.u32 %v343, 7
        %v345 = vsub.s32 1, %v344
        %v346 = vrot.slane %v337, %v345
        %v381 = vunpack.c.l.b16 %v305
        %v382 = vunpack.c.h.b16 %v305
        %v383 = vunpack.c.l.b16 %v306
        %v384 = vunpack.c.h.b16 %v306
        %v385 = vunpack.c.l.b16 %v307
        %v386 = vunpack.c.h.b16 %v307
        %v387 = vunpack.c.l.b16 %v308
        %v388 = vunpack.c.h.b16 %v308
        %v389 = vunpack.c.l.b16 %v309
        %v390 = vunpack.c.h.b16 %v309
        %v391 = vunpack.c.l.b16 %v310
        %v392 = vunpack.c.h.b16 %v310
        %v393 = vunpack.c.l.b16 %v311
        %v394 = vunpack.c.h.b16 %v311
        %v395 = vunpack.c.l.b16 %v312
        %v396 = vunpack.c.h.b16 %v312
        %v397 = vunpack.c.l.b16 %v313
        %v398 = vunpack.c.h.b16 %v313
        %v399 = vunpack.c.l.b16 %v314
        %v400 = vunpack.c.h.b16 %v314
        %v401 = vunpack.c.l.b16 %v315
        %v402 = vunpack.c.h.b16 %v315
        %v403 = vunpack.c.l.b16 %v316
        %v404 = vunpack.c.h.b16 %v316
        %v405 = vunpack.c.l.b16 %v317
        %v406 = vunpack.c.h.b16 %v317
        %v407 = vunpack.c.l.b16 %v318
        %v408 = vunpack.c.h.b16 %v318
        %v409 = vunpack.c.l.b16 %v319
        %v410 = vunpack.c.h.b16 %v319
        %v411 = vunpack.c.l.b16 %v320
        %v412 = vunpack.c.h.b16 %v320
        %v413 = vunpack.c.l.b16 %v321
        %v414 = vunpack.c.h.b16 %v321
        %v415 = vunpack.c.l.b16 %v322
        %v416 = vunpack.c.h.b16 %v322
        %v417 = vunpack.c.l.b16 %v323
        %v418 = vunpack.c.h.b16 %v323
        %v419 = vunpack.c.l.b16 %v324
        %v420 = vunpack.c.h.b16 %v324
        %v421 = vunpack.c.l.b16 %v325
        %v422 = vunpack.c.h.b16 %v325
        %v423 = vunpack.c.l.b16 %v326
        %v424 = vunpack.c.h.b16 %v326
        %v425 = vunpack.c.l.b16 %v327
        %v426 = vunpack.c.h.b16 %v327
        %v427 = vunpack.c.l.b16 %v328
        %v428 = vunpack.c.h.b16 %v328
        %v429 = vunpack.c.l.b16 %v329
        %v430 = vunpack.c.h.b16 %v329
        %v431 = vunpack.c.l.b16 %v330
        %v432 = vunpack.c.h.b16 %v330
        %v433 = vunpack.c.l.b16 %v331
        %v434 = vunpack.c.h.b16 %v331
        %v435 = vunpack.c.l.b16 %v332
        %v436 = vunpack.c.h.b16 %v332
        %v437 = vunpack.c.l.b16 %v333
        %v438 = vunpack.c.h.b16 %v333
        %v439 = vunpack.c.l.b16 %v334
        %v440 = vunpack.c.h.b16 %v334
        %v441 = vunpack.c.l.b16 %v335
        %v442 = vunpack.c.h.b16 %v335
        %v443 = vunpack.c.l.b16 %v336
        %v444 = vunpack.c.h.b16 %v336
        %v445 = vpack.c.b16 %v383, %v381
        %v446 = vpack.c.b16 %v384, %v382
        %v447 = vpack.c.b16 %v387, %v385
        %v448 = vpack.c.b16 %v388, %v386
        %v449 = vpack.c.b16 %v391, %v389
        %v450 = vpack.c.b16 %v392, %v390
        %v451 = vpack.c.b16 %v395, %v393
        %v452 = vpack.c.b16 %v396, %v394
        %v453 = vpack.c.b16 %v399, %v397
        %v454 = vpack.c.b16 %v400, %v398
        %v455 = vpack.c.b16 %v403, %v401
        %v456 = vpack.c.b16 %v404, %v402
        %v457 = vpack.c.b16 %v407, %v405
        %v458 = vpack.c.b16 %v408, %v406
        %v459 = vpack.c.b16 %v411, %v409
        %v460 = vpack.c.b16 %v412, %v410
        %v461 = vpack.c.b16 %v415, %v413
        %v462 = vpack.c.b16 %v416, %v414
        %v463 = vpack.c.b16 %v419, %v417
        %v464 = vpack.c.b16 %v420, %v418
        %v465 = vpack.c.b16 %v423, %v421
        %v466 = vpack.c.b16 %v424, %v422
        %v467 = vpack.c.b16 %v427, %v425
        %v468 = vpack.c.b16 %v428, %v426
        %v469 = vpack.c.b16 %v431, %v429
        %v470 = vpack.c.b16 %v432, %v430
        %v471 = vpack.c.b16 %v435, %v433
        %v472 = vpack.c.b16 %v436, %v434
        %v473 = vpack.c.b16 %v439, %v437
        %v474 = vpack.c.b16 %v440, %v438
        %v475 = vpack.c.b16 %v443, %v441
        %v476 = vpack.c.b16 %v444, %v442
        %509 = vmatprep.subr.bf16.mxu0 %v446
        %510 = vmatpush1.bf16.msra.mxu0 %v445
        %511 = vmatprep.subr.bf16.mxu0 %v448
        %512 = vmatpush1.bf16.msra.mxu0 %v447
        %513 = vmatprep.subr.bf16.mxu0 %v450
        %514 = vmatpush1.bf16.msra.mxu0 %v449
        %515 = vmatprep.subr.bf16.mxu0 %v452
        %516 = vmatpush1.bf16.msra.mxu0 %v451
        %517 = vmatprep.subr.bf16.mxu0 %v454
        %518 = vmatpush1.bf16.msra.mxu0 %v453
        %519 = vmatprep.subr.bf16.mxu0 %v456
        %520 = vmatpush1.bf16.msra.mxu0 %v455
        %521 = vmatprep.subr.bf16.mxu0 %v458
        %522 = vmatpush1.bf16.msra.mxu0 %v457
        %523 = vmatprep.subr.bf16.mxu0 %v460
        %524 = vmatpush1.bf16.msra.mxu0 %v459
        %525 = vmatprep.subr.bf16.mxu0 %v462
        %526 = vmatpush1.bf16.msra.mxu0 %v461
        %527 = vmatprep.subr.bf16.mxu0 %v464
        %528 = vmatpush1.bf16.msra.mxu0 %v463
        %529 = vmatprep.subr.bf16.mxu0 %v466
        %530 = vmatpush1.bf16.msra.mxu0 %v465
        %531 = vmatprep.subr.bf16.mxu0 %v468
        %532 = vmatpush1.bf16.msra.mxu0 %v467
        %533 = vmatprep.subr.bf16.mxu0 %v470
        %534 = vmatpush1.bf16.msra.mxu0 %v469
        %535 = vmatprep.subr.bf16.mxu0 %v472
        %536 = vmatpush1.bf16.msra.mxu0 %v471
        %537 = vmatprep.subr.bf16.mxu0 %v474
        %538 = vmatpush1.bf16.msra.mxu0 %v473
        %539 = vmatprep.subr.bf16.mxu0 %v476
        %540 = vmatpush1.bf16.msra.mxu0 %v475
        %541 = vmatprep.mubr.bf16.mxu0 %v304
        %542 = vmatmul.mubr.bf16.gmra.mrb[0].mxu0 %v303
        %v543 = vpop.f32.mrb[0].mxu0
        %v544 = vadd.f32 %v342, %v543
        %v545 = vpop.f32.mrb[0].mxu0
        %v546 = vadd.f32 %v346, %v545
        %v547 = vpop.f32.mrb[0].mxu0
        %v548 = vpop.f32.mrb[0].mxu0
        %549 = vdwg.mxu0
        %v550 = vmul.f32 %v544, 0.5
        %v551 = vmul.f32 %v546, 0.5
        %v552 = vmul.f32 %v544, 0.044715
        %v553 = vmul.f32 %v546, 0.044715
        %v554 = vmul.f32 %v552, %v544
        %v555 = vmul.f32 %v553, %v546
        %v556 = vmul.f32 %v554, %v544
        %v557 = vmul.f32 %v555, %v546
        %v558 = vadd.f32 %v544, %v556
        %v559 = vadd.f32 %v546, %v557
        %v560 = vmul.f32 %v558, 0.7978846
        %v561 = vmul.f32 %v559, 0.7978846
        %v562 = vtanh.pop %v560
        %v563 = vtanh.pop %v561
        %v564 = vadd.f32 %v562, 1.0
        %v565 = vadd.f32 %v563, 1.0
        %v566 = vmul.f32 %v550, %v564
        %v567 = vmul.f32 %v551, %v565
        %v568 = vadd.f32 %v256, %v566
        %v569 = vadd.f32 %v257, %v567
        %570 = vst [vmem:[%s255] sm:$0xff] %v568
        %571 = vst [vmem:[%s255 + $0x8] sm:$0xff] %v569
        %s572 = sand.u32 %s141, 1
        %s573 = scalar_lea.sflag [#allocation4], %s572
        %s574 = sand.u32 %s141, 1
        %s575 = smul.addr %s574, 16
        %s576 = scalar_lea.vmem [#allocation7], %s575
        // Predicated region
        $region49: #{tpu_custom_call.1} parent=39 // pred_check
          %p577 = pneg %p151
        $region50: #{tpu_custom_call.1} parent=39 // pred_check_branch
          %579 = sbr.rel (%p577) target = $region52
        $region51: #{tpu_custom_call.1} parent=39 // pred_region
          %s581 = ssub.s32 256, 256
          %582 = vsyncadd %s573, %s581
          %s583 = smul.addr %s23, 2
          %s584 = smul.addr %s583, 128
          %s585 = scalar_lea.hbm %s5, %s584
          %s587 = sshll.u32 %s576, 4
          %s588 = int_to_ptr.vmem [resolvable:$true] %s587
          %590 = dma.vmem_to_hbm [thread:$0]  %s588, 256, %s585, %s573
        $region52: #{tpu_custom_call.1} parent=39 // pred_fallthru
          _
      $region40: #{tpu_custom_call.1} parent=5 // pred_fallthru
        _
      %p591 = scmp.le.s32.totalorder 2, %s18
      // Predicated region
      $region53: #{tpu_custom_call.1} parent=5 // pred_check
        %p592 = pneg %p591
      $region54: #{tpu_custom_call.1} parent=5 // pred_check_branch
        %594 = sbr.rel (%p592) target = $region56
      $region55: #{tpu_custom_call.1} parent=5 // pred_region
        %s595 = ssub.s32 %s18, 2
        // Predicated region
        $region57: #{tpu_custom_call.1} parent=55 // pred_check
          %p596 = pneg %p157
        $region58: #{tpu_custom_call.1} parent=55 // pred_check_branch
          %598 = sbr.rel (%p596) target = $region60
        $region59: #{tpu_custom_call.1} parent=55 // pred_region
          %s599 = sand.u32 %s142, 1
          %s600 = scalar_lea.sflag [#allocation4], %s599
          %s601 = sand.u32 %s142, 1
          %s602 = smul.addr %s601, 16
          %s603 = scalar_lea.vmem [#allocation7], %s602
          %604 = dma.done %s600, 256
        $region60: #{tpu_custom_call.1} parent=55 // pred_fallthru
          _
      $region56: #{tpu_custom_call.1} parent=5 // pred_fallthru
        _
    $region6: #{tpu_custom_call.1} parent=1 // loop_footer
      %s22 = sadd.s32 1, %s18
    $region7: #{tpu_custom_call.1} parent=1 // loop_footer_branch
      %17 = sbr.rel target = $region3
    $region8: #{tpu_custom_call.1} parent=1 // loop_exit
      _
    %605 = vsyncpa [#allocation3], 1
    %s606 = scalar_lea.sflag [#allocation3], 1
    %607 = vsyncpa %s606, 1
    %608 = vsyncpa [#allocation6], 1
    %609 = vsyncpa [#allocation4], 1
    %s610 = scalar_lea.sflag [#allocation4], 1
    %611 = vsyncpa %s610, 1

</llo_original>
